<compile_context>
chip_gen: v6e
topology: v6e:2x2x1
jax: 0.10.0
libtpu: 0.0.40
codegen_flags: <defaults>
</compile_context>

<pallas_src>
import functools

import jax
import jax.numpy as jnp
from jax.experimental import pallas as pl
from jax.experimental.pallas import tpu as pltpu

_SUBLANE = 8
_MAX_TILE_N = 4096               # rows per tile cap (diminishing returns past this)
_MIN_BLOCK_BYTES = 1 << 20       # keep each input block >= ~1 MiB for DMA efficiency
_TARGET_GRID_STEPS = 4           # >= 2 steps lets both v7x TensorCores participate


def _round_up(x, m):
    return ((x + m - 1) // m) * m


def _vmem_capacity_bytes():
    """Best-effort physical VMEM query; conservative (v7x per-TC) fallback."""
    try:
        info = pltpu.get_tpu_info()
        for name in ("vmem_capacity_bytes", "vmem_size_bytes", "vmem_bytes"):
            v = getattr(info, name, None)
            if v:
                return int(v)
    except Exception:
        pass
    return 64 << 20


def _distill_kl_kernel(ys_ref, yt_ref, out_ref, *, inv_t, scale):
    """Per-row  scale * KL(softmax(y_t/T) || softmax(y_s/T))  for a (tile_n, C) slab."""
    ys = ys_ref[...].astype(jnp.float32) * inv_t
    yt = yt_ref[...].astype(jnp.float32) * inv_t

    # student log-partition (over the class / lane axis)
    ys_shift = ys - jnp.max(ys, axis=-1, keepdims=True)
    log_z_s = jnp.log(jnp.sum(jnp.exp(ys_shift), axis=-1, keepdims=True))

    # teacher softmax pieces
    yt_shift = yt - jnp.max(yt, axis=-1, keepdims=True)
    e_t = jnp.exp(yt_shift)
    z_t = jnp.sum(e_t, axis=-1, keepdims=True)
    log_z_t = jnp.log(z_t)

    # sum_j p_t (log p_t - log p_s)
    #   = (1/z_t) * sum_j e_t * (yt_shift - ys_shift)  +  (log_z_s - log_z_t)
    inner = jnp.sum(e_t * (yt_shift - ys_shift), axis=-1, keepdims=True)
    row = inner * pl.reciprocal(z_t, approx=True) + (log_z_s - log_z_t)
    out_ref[...] = row * scale


def _choose_tile_n(n, row_bytes, input_budget):
    """Largest multiple-of-8 row tile fitting the double-buffered VMEM budget,
    preferring >= _TARGET_GRID_STEPS grid steps without shrinking blocks below
    ~1 MiB of input bytes."""
    budget_rows = max(_SUBLANE, input_budget // (4 * row_bytes))  # 2 inputs x 2 buffers
    tile = min(budget_rows, _MAX_TILE_N, _round_up(n, _SUBLANE))
    steps_cap = _round_up(pl.cdiv(n, _TARGET_GRID_STEPS), _SUBLANE)
    dma_floor = _round_up(max(1, _MIN_BLOCK_BYTES // row_bytes), _SUBLANE)
    tile = min(tile, max(steps_cap, dma_floor))
    return max(_SUBLANE, (tile // _SUBLANE) * _SUBLANE)


def _distill_kl_pair(y_s, y_t, *, temperature):
    """Pallas KL-distillation loss for a single (student, teacher) [N, C] pair."""
    assert y_s.ndim == 2 and y_s.shape == y_t.shape
    n, c = y_s.shape
    t = float(temperature)

    dtype = jnp.result_type(y_s.dtype, y_t.dtype)
    y_s = y_s.astype(dtype)
    y_t = y_t.astype(dtype)
    itemsize = jnp.dtype(dtype).itemsize
    row_bytes = c * itemsize

    vmem_cap = _vmem_capacity_bytes()
    if vmem_cap >= (96 << 20):              # v5e / v6e: 128 MiB physical VMEM
        input_budget, vmem_limit = 48 << 20, 64 << 20
    else:                                   # v7x: 64 MiB per TensorCore
        input_budget, vmem_limit = 20 << 20, 48 << 20

    tile_n = _choose_tile_n(n, row_bytes, input_budget)

    # Very large class counts: even tile_n=8 may need more scoped VMEM.
    block_in_bytes = 4 * tile_n * row_bytes  # 2 inputs x 2 pipeline buffers
    if block_in_bytes + (2 << 20) > vmem_limit:
        vmem_limit = min(max(vmem_limit, block_in_bytes + (2 << 20)),
                         max(vmem_cap - (8 << 20), vmem_limit))
        # TODO(synk): for C so large that even an 8-row double-buffered block
        # overflows VMEM, a class-axis grid with an online logsumexp is needed.

    grid = (pl.cdiv(n, tile_n),)
    kernel = functools.partial(_distill_kl_kernel,
                               inv_t=1.0 / t,
                               scale=(t * t) / float(n))

    cost = pl.CostEstimate(
        flops=int(10 * n * c),
        transcendentals=int(2 * n * c + 3 * n),
        bytes_accessed=int(2 * n * c * itemsize + n * 4),
    )

    row_kl = pl.pallas_call(
        kernel,
        out_shape=jax.ShapeDtypeStruct((n, 1), jnp.float32),
        grid=grid,
        in_specs=[
            pl.BlockSpec((tile_n, c), lambda i: (i, 0)),
            pl.BlockSpec((tile_n, c), lambda i: (i, 0)),
        ],
        out_specs=pl.BlockSpec((tile_n, 1), lambda i: (i, 0)),
        compiler_params=pltpu.CompilerParams(
            dimension_semantics=("parallel",),   # independent tiles -> megacore-friendly
            vmem_limit_bytes=int(vmem_limit),
        ),
        cost_estimate=cost,
    )(y_s, y_t)

    # Tiny epilogue: the T^2/N weight is already applied in-kernel.
    return jnp.sum(row_kl)


def distill_kl_loss(g_s, g_t, *, temperature=1.0):
    """Sum of per-pair KL distillation losses (one fused pallas_call per pair)."""
    pairs = list(zip(g_s, g_t))
    assert len(pairs) >= 1
    total = _distill_kl_pair(pairs[0][0], pairs[0][1], temperature=temperature)
    for ys, yt in pairs[1:]:
        total = total + _distill_kl_pair(ys, yt, temperature=temperature)
    return total


class DistillKL:
    """JAX/Pallas port of the PyTorch DistillKL module."""

    def __init__(self, T=1):
        self.T = float(T)

    def cal_loss(self, y_s, y_t):
        return distill_kl_loss((y_s,), (y_t,), temperature=self.T)

    def __call__(self, g_s, g_t):
        if isinstance(g_s, list):
            if len(g_s) == 3:
                g_s = (g_s[0], g_s[1], g_s[2])
                g_t = (g_t[0], g_t[1], g_t[2])
            elif len(g_s) == 1:
                # TODO(synk): PyTorch unwraps the single tensor and zips over dim 0,
                # then calls log_softmax(dim=1) on 1-D slices (invalid); not reproduced.
                g_s = (g_s[0],)
                g_t = (g_t[0],)
        return distill_kl_loss(tuple(g_s), tuple(g_t), temperature=self.T)


def _reference_loss(g_s, g_t, T):
    """Pure-JAX reference for correctness checking."""
    total = 0.0
    for y_s, y_t in zip(g_s, g_t):
        log_p_s = jax.nn.log_softmax(y_s / T, axis=1)
        p_t = jax.nn.softmax(y_t / T, axis=1)
        log_p_t = jax.nn.log_softmax(y_t / T, axis=1)
        kl = jnp.sum(p_t * (log_p_t - log_p_s))
        total = total + kl * (T ** 2) / y_s.shape[0]
    return total


if __name__ == "__main__":
    key = jax.random.PRNGKey(0)
    T = 2.0
    N, C = 16, 32  # small logit shapes: batch=16, classes=32
    num_pairs = 3

    keys = jax.random.split(key, 2 * num_pairs + 2)
    g_s = tuple(jax.random.normal(keys[i], (N, C), jnp.float32) * 3.0
                for i in range(num_pairs))
    g_t = tuple(jax.random.normal(keys[num_pairs + i], (N, C), jnp.float32) * 3.0
                for i in range(num_pairs))

    crit = DistillKL(T=T)
    loss = jax.block_until_ready(crit(g_s, g_t))
    ref = jax.block_until_ready(_reference_loss(g_s, g_t, T))
    # approx reciprocal => slightly looser tolerance than exact divide
    assert jnp.allclose(loss, ref, rtol=1e-3, atol=1e-3), (loss, ref)

    # Single-pair API still works.
    single = jax.block_until_ready(crit.cal_loss(g_s[0], g_t[0]))
    ref1 = jax.block_until_ready(_reference_loss(g_s[:1], g_t[:1], T))
    assert jnp.allclose(single, ref1, rtol=1e-3, atol=1e-3), (single, ref1)

    # Ragged / unaligned shapes (N not a multiple of 8, C not a multiple of 128)
    # exercise the no-padding path.
    ys_r = jax.random.normal(keys[-2], (13, 100), jnp.float32) * 2.0
    yt_r = jax.random.normal(keys[-1], (13, 100), jnp.float32) * 2.0
    ragged = jax.block_until_ready(crit.cal_loss(ys_r, yt_r))
    ref_r = jax.block_until_ready(_reference_loss((ys_r,), (yt_r,), T))
    assert jnp.allclose(ragged, ref_r, rtol=1e-3, atol=1e-3), (ragged, ref_r)

    print("KERNEL_OK")
</pallas_src>

<mosaic_0001>
module attributes {stable_mosaic.version = 11 : i64} {
  func.func @_distill_kl_kernel(%arg0: i32, %arg1: memref<16x32xf32, #tpu.memory_space<vmem>>, %arg2: memref<16x32xf32, #tpu.memory_space<vmem>>, %arg3: memref<16x1xf32, #tpu.memory_space<vmem>>) attributes {dimension_semantics = [#tpu.dimension_semantics<parallel>], iteration_bounds = array<i64: 1>, scalar_prefetch = 0 : i64, scratch_operands = 0 : i64, tpu.core_type = #tpu.core_type<tc>, window_params = [{transform_indices = @transform_0, window_bounds = array<i64: 16, 32>}, {transform_indices = @transform_1, window_bounds = array<i64: 16, 32>}, {transform_indices = @transform_2, window_bounds = array<i64: 16, 1>}]} {
    %c0 = arith.constant 0 : index
    %c0_0 = arith.constant 0 : index
    %0 = vector.load %arg1[%c0, %c0_0] : memref<16x32xf32, #tpu.memory_space<vmem>>, vector<16x32xf32>
    %cst = arith.constant 5.000000e-01 : f32
    %1 = vector.broadcast %cst : f32 to vector<16x32xf32>
    %2 = arith.mulf %0, %1 : vector<16x32xf32>
    %c0_1 = arith.constant 0 : index
    %c0_2 = arith.constant 0 : index
    %3 = vector.load %arg2[%c0_1, %c0_2] : memref<16x32xf32, #tpu.memory_space<vmem>>, vector<16x32xf32>
    %cst_3 = arith.constant 5.000000e-01 : f32
    %4 = vector.broadcast %cst_3 : f32 to vector<16x32xf32>
    %5 = arith.mulf %3, %4 : vector<16x32xf32>
    %cst_4 = arith.constant dense<0xFF800000> : vector<16xf32>
    %6 = vector.multi_reduction <maximumf>, %2, %cst_4 [1] : vector<16x32xf32> to vector<16xf32>
    %7 = vector.shape_cast %6 : vector<16xf32> to vector<16x1xf32>
    %8 = vector.broadcast %7 : vector<16x1xf32> to vector<16x32xf32>
    %9 = arith.subf %2, %8 : vector<16x32xf32>
    %10 = math.exp %9 : vector<16x32xf32>
    %cst_5 = arith.constant dense<0.000000e+00> : vector<16xf32>
    %11 = vector.multi_reduction <add>, %10, %cst_5 [1] : vector<16x32xf32> to vector<16xf32>
    %12 = vector.shape_cast %11 : vector<16xf32> to vector<16x1xf32>
    %13 = math.log %12 : vector<16x1xf32>
    %cst_6 = arith.constant dense<0xFF800000> : vector<16xf32>
    %14 = vector.multi_reduction <maximumf>, %5, %cst_6 [1] : vector<16x32xf32> to vector<16xf32>
    %15 = vector.shape_cast %14 : vector<16xf32> to vector<16x1xf32>
    %16 = vector.broadcast %15 : vector<16x1xf32> to vector<16x32xf32>
    %17 = arith.subf %5, %16 : vector<16x32xf32>
    %18 = math.exp %17 : vector<16x32xf32>
    %cst_7 = arith.constant dense<0.000000e+00> : vector<16xf32>
    %19 = vector.multi_reduction <add>, %18, %cst_7 [1] : vector<16x32xf32> to vector<16xf32>
    %20 = vector.shape_cast %19 : vector<16xf32> to vector<16x1xf32>
    %21 = math.log %20 : vector<16x1xf32>
    %22 = arith.subf %17, %9 : vector<16x32xf32>
    %23 = arith.mulf %18, %22 : vector<16x32xf32>
    %cst_8 = arith.constant dense<0.000000e+00> : vector<16xf32>
    %24 = vector.multi_reduction <add>, %23, %cst_8 [1] : vector<16x32xf32> to vector<16xf32>
    %25 = vector.shape_cast %24 : vector<16xf32> to vector<16x1xf32>
    %26 = tpu.reciprocal %20 {approx = true} : vector<16x1xf32> -> vector<16x1xf32>
    %27 = arith.mulf %25, %26 : vector<16x1xf32>
    %28 = arith.subf %13, %21 : vector<16x1xf32>
    %29 = arith.addf %27, %28 : vector<16x1xf32>
    %cst_9 = arith.constant 2.500000e-01 : f32
    %30 = vector.broadcast %cst_9 : f32 to vector<16x1xf32>
    %31 = arith.mulf %29, %30 : vector<16x1xf32>
    %c0_10 = arith.constant 0 : index
    %c0_11 = arith.constant 0 : index
    %32 = vector.load %arg3[%c0_10, %c0_11] : memref<16x1xf32, #tpu.memory_space<vmem>>, vector<16x1xf32>
    tpu.vector_store %arg3[%c0_10, %c0_11], %31 {strides = array<i32>} : memref<16x1xf32, #tpu.memory_space<vmem>>, vector<16x1xf32>,
    return
  }
  func.func @transform_0(%arg0: i32) -> (i32, i32) {
    %c0_i32 = arith.constant 0 : i32
    %c0_i32_0 = arith.constant 0 : i32
    return %arg0, %c0_i32 : i32, i32
  }
  func.func @transform_1(%arg0: i32) -> (i32, i32) {
    %c0_i32 = arith.constant 0 : i32
    %c0_i32_0 = arith.constant 0 : i32
    return %arg0, %c0_i32 : i32, i32
  }
  func.func @transform_2(%arg0: i32) -> (i32, i32) {
    %c0_i32 = arith.constant 0 : i32
    %c0_i32_0 = arith.constant 0 : i32
    return %arg0, %c0_i32 : i32, i32
  }
}

</mosaic_0001>

<llo_original>
// kernel: tpu_custom_call.1
$region0: #{tpu_custom_call.1}
  #allocation0 [shape = 'u32[]', space=smem, size = 0x4, offset = 0x4, fixed_abs, tag = 'smem constant byte address 0x4 - core index']
  #allocation1 [shape = 'u32[144,128]{1,0:T(1,128)}', space=vmem, size = 0x12000, scoped, tag = 'internal scratch']
  %s0 = inlined_call_operand.hbm [shape: f32[16,32], index: 0, kind: input, shape index: {}]
  %s1 = inlined_call_operand.hbm [shape: f32[16,32], index: 1, kind: input, shape index: {}]
  %s2 = inlined_call_operand.vmem [shape: f32[16,1], index: 2, kind: output, shape index: {}]
  %s3 = sld [smem:[#allocation0]]
  $region26: #{tpu_custom_call.1} parent=0
    _
  %s5 = ssub.s32 1, %s3
  %s6 = scalar_select 0, %s5, %s3
  $region1: #{tpu_custom_call.1} parent=0
    #allocation2 [shape = 'u8[8192]{0}', space=vmem, size = 0x2000, scoped, tag = 'input window, operand 0, single buffered']
    #allocation3 [shape = 's32[1]{0}', space=sflag, size = 0x4, scoped, tag = 'scoped memory for tpu_custom_call.1']
    #allocation4 [shape = 'u8[8192]{0}', space=vmem, size = 0x2000, scoped, tag = 'input window, operand 1, single buffered']
    #allocation5 [shape = 's32[1]{0}', space=sflag, size = 0x4, scoped, tag = 'scoped memory for tpu_custom_call.1']
    %7 = vsyncpa [#allocation3], 0
    %8 = vsyncpa [#allocation5], 0
    // Predicated region
    $region2: #{tpu_custom_call.1} parent=1 // pred_check
      _
    $region3: #{tpu_custom_call.1} parent=1 // pred_check_branch
      %10 = sbr.rel (0) target = $region5
    $region4: #{tpu_custom_call.1} parent=1 // pred_region
      %s12 = ssub.s32 256, 256
      %13 = vsyncadd [#allocation3], %s12
      %s14 = sshll.u32 [#allocation2], 4
      %s15 = int_to_ptr.vmem [resolvable:$true] %s14
      %20 = dma.hbm_to_vmem [thread:$0]  %s0, 256, %s15, [#allocation3], 128, 128, 8
    $region5: #{tpu_custom_call.1} parent=1 // pred_fallthru
      _
    // Predicated region
    $region6: #{tpu_custom_call.1} parent=1 // pred_check
      _
    $region7: #{tpu_custom_call.1} parent=1 // pred_check_branch
      %22 = sbr.rel (0) target = $region9
    $region8: #{tpu_custom_call.1} parent=1 // pred_region
      %s24 = ssub.s32 256, 256
      %25 = vsyncadd [#allocation5], %s24
      %s26 = sshll.u32 [#allocation4], 4
      %s27 = int_to_ptr.vmem [resolvable:$true] %s26
      %32 = dma.hbm_to_vmem [thread:$0]  %s1, 256, %s27, [#allocation5], 128, 128, 8
    $region9: #{tpu_custom_call.1} parent=1 // pred_fallthru
      _
    // Predicated region
    $region10: #{tpu_custom_call.1} parent=1 // pred_check
      _
    $region11: #{tpu_custom_call.1} parent=1 // pred_check_branch
      %34 = sbr.rel (0) target = $region13
    $region12: #{tpu_custom_call.1} parent=1 // pred_region
      %35 = dma.done [#allocation3], 256
    $region13: #{tpu_custom_call.1} parent=1 // pred_fallthru
      _
    // Predicated region
    $region14: #{tpu_custom_call.1} parent=1 // pred_check
      _
    $region15: #{tpu_custom_call.1} parent=1 // pred_check_branch
      %37 = sbr.rel (0) target = $region17
    $region16: #{tpu_custom_call.1} parent=1 // pred_region
      %38 = dma.done [#allocation5], 256
    $region17: #{tpu_custom_call.1} parent=1 // pred_fallthru
      _
    %v39 = vld [vmem:[#allocation2] sm:$0xff]
    %v40 = vld [vmem:[#allocation2 + $0x8] sm:$0xff]
    %v41 = vmul.f32 %v39, 0.5
    %v42 = vmul.f32 %v40, 0.5
    %v43 = vld [vmem:[#allocation4] sm:$0xff]
    %v44 = vld [vmem:[#allocation4 + $0x8] sm:$0xff]
    %v45 = vmul.f32 %v43, 0.5
    %v46 = vmul.f32 %v44, 0.5
    %vm47 = vcmask 261120
    %v48 = vsel %vm47, %v41, -inf
    %49 = vmax.xlane.f32.xlu0 %v48
    %v50 = vpop.xlane.xlu0 %49
    %v51 = vsel %vm47, %v42, -inf
    %52 = vmax.xlane.f32.xlu0 %v51
    %v53 = vpop.xlane.xlu0 %52
    %v54 = vsub.f32 %v41, %v50
    %v55 = vsub.f32 %v42, %v53
    %v56 = vmul.f32 %v54, 1.442695
    %v57 = vpow.pop %v56
    %v58 = vmul.f32 %v55, 1.442695
    %v59 = vpow.pop %v58
    %v60 = vsel %vm47, %v57, 0.0
    %61 = vadd.xlane.f32.xlu0 %v60
    %v62 = vpop.xlane.xlu0 %61
    %v63 = vsel %vm47, %v59, 0.0
    %64 = vadd.xlane.f32.xlu0 %v63
    %v65 = vpop.xlane.xlu0 %64
    %v66 = vlog2.pop %v62
    %v67 = vmul.f32 %v66, 0.6931472
    %v68 = vlog2.pop %v65
    %v69 = vmul.f32 %v68, 0.6931472
    %v70 = vsel %vm47, %v45, -inf
    %71 = vmax.xlane.f32.xlu0 %v70
    %v72 = vpop.xlane.xlu0 %71
    %v73 = vsel %vm47, %v46, -inf
    %74 = vmax.xlane.f32.xlu0 %v73
    %v75 = vpop.xlane.xlu0 %74
    %v76 = vsub.f32 %v45, %v72
    %v77 = vsub.f32 %v46, %v75
    %v78 = vmul.f32 %v76, 1.442695
    %v79 = vpow.pop %v78
    %v80 = vmul.f32 %v77, 1.442695
    %v81 = vpow.pop %v80
    %v82 = vsel %vm47, %v79, 0.0
    %83 = vadd.xlane.f32.xlu0 %v82
    %v84 = vpop.xlane.xlu0 %83
    %v85 = vsel %vm47, %v81, 0.0
    %86 = vadd.xlane.f32.xlu0 %v85
    %v87 = vpop.xlane.xlu0 %86
    %v88 = vlog2.pop %v84
    %v89 = vmul.f32 %v88, 0.6931472
    %v90 = vlog2.pop %v87
    %v91 = vmul.f32 %v90, 0.6931472
    %v92 = vsub.f32 %v76, %v54
    %v93 = vsub.f32 %v77, %v55
    %v94 = vmul.f32 %v79, %v92
    %v95 = vmul.f32 %v81, %v93
    %v96 = vsel %vm47, %v94, 0.0
    %97 = vadd.xlane.f32.xlu0 %v96
    %v98 = vpop.xlane.xlu0 %97
    %v99 = vsel %vm47, %v95, 0.0
    %100 = vadd.xlane.f32.xlu0 %v99
    %v101 = vpop.xlane.xlu0 %100
    %v102 = vrcp.pop %v84
    %v103 = vrcp.pop %v87
    %v104 = vmul.f32 %v98, %v102
    %v105 = vmul.f32 %v101, %v103
    %v106 = vsub.f32 %v67, %v89
    %v107 = vsub.f32 %v69, %v91
    %v108 = vadd.f32 %v104, %v106
    %v109 = vadd.f32 %v105, %v107
    %v110 = vmul.f32 %v108, 0.25
    %v111 = vmul.f32 %v109, 0.25
    %vm112 = vcmask 7168
    %113 = vst.msk [vmem:[%s2] sm:$0xff] %vm112, %v110
    %114 = vst.msk [vmem:[%s2 + $0x8] sm:$0xff] %vm112, %v111
    // Predicated region
    $region18: #{tpu_custom_call.1} parent=1 // pred_check
      _
    $region19: #{tpu_custom_call.1} parent=1 // pred_check_branch
      %116 = sbr.rel (0) target = $region21
    $region20: #{tpu_custom_call.1} parent=1 // pred_region
      _
    $region21: #{tpu_custom_call.1} parent=1 // pred_fallthru
      _
    // Predicated region
    $region22: #{tpu_custom_call.1} parent=1 // pred_check
      _
    $region23: #{tpu_custom_call.1} parent=1 // pred_check_branch
      %118 = sbr.rel (0) target = $region25
    $region24: #{tpu_custom_call.1} parent=1 // pred_region
      _
    $region25: #{tpu_custom_call.1} parent=1 // pred_fallthru
      _
    %119 = vsyncpa [#allocation3], 1
    %120 = vsyncpa [#allocation5], 1

</llo_original>
